<compile_context>
chip_gen: v7x
topology: tpu7x:2x2x1
jax: 0.10.0
libtpu: 0.0.40
codegen_flags: <defaults>
</compile_context>

<pallas_src>
import functools

import jax
import jax.numpy as jnp
import numpy as np
from jax import lax
from jax.experimental import pallas as pl
from jax.experimental.pallas import tpu as pltpu


def _round_up(x, m):
    return ((x + m - 1) // m) * m


# --- probe: single-buffered resident blocks (fall back gracefully if unsupported) ---
try:
    pl.BlockSpec((8, 128), lambda i: (0, 0), pipeline_mode=pl.Buffered(1))
    _KV_BUFS = 1
    _KV_PIPELINE_KW = {"pipeline_mode": pl.Buffered(1)}
except Exception:  # pragma: no cover - older/alternate pallas builds
    _KV_BUFS = 2
    _KV_PIPELINE_KW = {}


def _vmem_budgets():
    """Generation-aware (per-TensorCore) VMEM tile budget and scoped-VMEM limit."""
    cap = 64 << 20  # conservative default: v7x has 64 MiB VMEM per TC
    try:
        cap = int(pltpu.get_tpu_info().vmem_capacity_bytes)
    except Exception:
        pass
    # Scoped limit: ~3/4 of physical, never above 96 MiB (v5e/v6e) / 48 MiB (v7x).
    limit = min((cap * 3) // 4, 96 << 20)
    # Tile-selection budget leaves headroom under the scoped limit.
    budget = max(limit - (16 << 20), 16 << 20)
    return budget, limit


def _sdpa_kernel(q_ref, kT_ref, v_ref, out_ref, attn_ref, log_attn_ref, *,
                 inv_temperature, lk_valid, lk_padded):
    # Blocks: q (TB, TQ, D), kT (TB, D, LKp), v (TB, LKp, Dv)
    # Fold the temperature into q: a (TQ, D) VPU multiply instead of an (TQ, Lk) divide.
    q = q_ref[...].astype(jnp.float32) * jnp.float32(inv_temperature)
    kT = kT_ref[...].astype(jnp.float32)
    v = v_ref[...].astype(jnp.float32)

    # scores = q @ k^T; K is pre-transposed so this is a plain MXU contraction
    # (no in-kernel relayout of the resident K block).
    scores = jnp.einsum("bqd,bdk->bqk", q, kT, preferred_element_type=jnp.float32)

    # Mask padded key columns (only when the key axis was padded to 128 lanes).
    if lk_padded != lk_valid:
        col = lax.broadcasted_iota(jnp.int32, (1, 1, lk_padded), 2)
        scores = jnp.where(col < lk_valid, scores, jnp.finfo(jnp.float32).min)

    # Numerically-stable softmax / log_softmax over the key axis, staged through
    # the output refs to keep the number of live (TQ, LKp) f32 temporaries small.
    m = jnp.max(scores, axis=-1, keepdims=True)
    log_attn_ref[...] = scores - m                       # shifted logits
    attn_ref[...] = jnp.exp(log_attn_ref[...])           # un-normalized probs
    denom = jnp.sum(attn_ref[...], axis=-1, keepdims=True)
    # Exact normalization (rows sum to 1; exp(log_attn) == attn up to rounding).
    attn_ref[...] = attn_ref[...] / denom
    log_attn_ref[...] = log_attn_ref[...] - jnp.log(denom)

    # output = attn @ v (f32 accumulate on the MXU). Dropout is identity in eval mode.
    out = jnp.einsum("bqk,bkd->bqd", attn_ref[...], v,
                     preferred_element_type=jnp.float32)
    out_ref[...] = out.astype(out_ref.dtype)


def scaled_dot_product_attention(q, k, v, temperature):
    """Pallas wrapper. q: (B, Lq, D), k: (B, Lk, D), v: (B, Lk, Dv)."""
    B, Lq, D = q.shape
    _, Lk, _ = k.shape
    Dv = v.shape[-1]

    # --- padding targets for lane/sublane alignment ---
    LKp = _round_up(Lk, 128)          # lane-dense attn/log_attn stores
    Lq8 = _round_up(Lq, 8)            # sublane alignment of the query tile

    vmem_budget, vmem_limit = _vmem_budgets()

    def footprint(tb, tq):
        # f32 VMEM bytes per grid step: pipeline buffers + in-kernel temporaries.
        return 4 * (
            2 * tb * tq * D              # q tiles (double-buffered)
            + _KV_BUFS * tb * D * LKp    # resident K^T block
            + _KV_BUFS * tb * LKp * Dv   # resident V block
            + 2 * tb * tq * Dv           # out tiles (double-buffered)
            + 4 * tb * tq * LKp          # attn + log_attn tiles (double-buffered)
            + 2 * tb * tq * LKp          # in-kernel f32 temporaries (scores, read-backs)
        )

    # Batch-pack tiny problems so one grid step fills whole (8,128) vregs and the
    # ~0.35us/step overhead is amortized.
    TB = B if (B * Lq8 * LKp * 4) <= (2 << 20) else 1

    # Pick TQ as ceil(Lq8 / n_tiles) so the padded query axis is n_tiles * TQ
    # (never ~2x the real Lq), shrinking n_tiles-wise only while over budget.
    n_tiles = max(1, -(-Lq8 // 512))
    while True:
        TQ = _round_up(-(-Lq8 // n_tiles), 8)
        if footprint(TB, TQ) <= vmem_budget or TQ <= 8:
            break
        if TB > 1:
            TB = 1          # un-pack the batch first, keep the wide query tile
            continue
        n_tiles += 1
    # TODO(synk): for very large Lk on v7x a key-tile grid axis with an online-softmax
    # epilogue would be preferable to letting TQ collapse toward 8.
    Lqp = n_tiles * TQ

    # --- pad inputs (zeros; padded keys masked in-kernel, padded queries sliced off) ---
    qp = q if Lqp == Lq else jnp.pad(q, ((0, 0), (0, Lqp - Lq), (0, 0)))
    kp = k if LKp == Lk else jnp.pad(k, ((0, 0), (0, LKp - Lk), (0, 0)))
    vp = v if LKp == Lk else jnp.pad(v, ((0, 0), (0, LKp - Lk), (0, 0)))
    kTp = jnp.swapaxes(kp, 1, 2)      # (B, D, LKp): lane-dense, no in-kernel transpose

    kernel = functools.partial(
        _sdpa_kernel,
        inv_temperature=1.0 / float(temperature),
        lk_valid=Lk,
        lk_padded=LKp,
    )

    out_shapes = (
        jax.ShapeDtypeStruct((B, Lqp, Dv), jnp.float32),   # output
        jax.ShapeDtypeStruct((B, Lqp, LKp), jnp.float32),  # attn
        jax.ShapeDtypeStruct((B, Lqp, LKp), jnp.float32),  # log_attn
    )

    grid = (B // TB, Lqp // TQ)

    grid_spec = pltpu.PrefetchScalarGridSpec(
        num_scalar_prefetch=0,
        grid=grid,
        in_specs=[
            pl.BlockSpec((TB, TQ, D), lambda b, i: (b, i, 0)),
            # K^T / V block index ignores i -> resident across Lq tiles; single-buffered.
            pl.BlockSpec((TB, D, LKp), lambda b, i: (b, 0, 0), **_KV_PIPELINE_KW),
            pl.BlockSpec((TB, LKp, Dv), lambda b, i: (b, 0, 0), **_KV_PIPELINE_KW),
        ],
        out_specs=[
            pl.BlockSpec((TB, TQ, Dv), lambda b, i: (b, i, 0)),
            pl.BlockSpec((TB, TQ, LKp), lambda b, i: (b, i, 0)),
            pl.BlockSpec((TB, TQ, LKp), lambda b, i: (b, i, 0)),
        ],
    )

    cost = pl.CostEstimate(
        flops=2 * B * Lqp * LKp * (D + Dv),
        transcendentals=B * Lqp * LKp,
        bytes_accessed=4 * (B * Lqp * D + B * LKp * D + B * LKp * Dv
                            + B * Lqp * Dv + 2 * B * Lqp * LKp),
    )

    out_p, attn_p, log_attn_p = pl.pallas_call(
        kernel,
        out_shape=out_shapes,
        grid_spec=grid_spec,
        compiler_params=pltpu.CompilerParams(
            dimension_semantics=("parallel", "parallel"),
            vmem_limit_bytes=int(vmem_limit),
        ),
        cost_estimate=cost,
    )(qp, kTp, vp)

    # --- strip padding ---
    out = out_p if Lqp == Lq else out_p[:, :Lq, :]
    attn = attn_p if (Lqp == Lq and LKp == Lk) else attn_p[:, :Lq, :Lk]
    log_attn = log_attn_p if (Lqp == Lq and LKp == Lk) else log_attn_p[:, :Lq, :Lk]
    return out, attn, log_attn


def _reference(q, k, v, temperature):
    attn = jnp.einsum("bqd,bkd->bqk", q, k) / temperature
    log_attn = jax.nn.log_softmax(attn, axis=2)
    attn = jax.nn.softmax(attn, axis=2)
    out = jnp.einsum("bqk,bkd->bqd", attn, v)
    return out, attn, log_attn


if __name__ == "__main__":
    # Small deterministic inputs: batch=2, seq=8, hidden=32
    B, L, D = 2, 8, 32
    temperature = float(np.power(D, 0.5))

    key = jax.random.PRNGKey(0)
    kq, kk, kv = jax.random.split(key, 3)
    q = jax.random.normal(kq, (B, L, D), dtype=jnp.float32)
    k = jax.random.normal(kk, (B, L, D), dtype=jnp.float32)
    v = jax.random.normal(kv, (B, L, D), dtype=jnp.float32)

    out, attn, log_attn = scaled_dot_product_attention(q, k, v, temperature)
    jax.block_until_ready((out, attn, log_attn))

    # sanity check against a pure-JAX reference (exact softmax normalization now)
    ref_out, ref_attn, ref_log_attn = _reference(q, k, v, temperature)
    np.testing.assert_allclose(np.asarray(attn), np.asarray(ref_attn), atol=1e-4, rtol=1e-4)
    np.testing.assert_allclose(np.asarray(out), np.asarray(ref_out), atol=1e-4, rtol=1e-4)
    np.testing.assert_allclose(np.asarray(log_attn), np.asarray(ref_log_attn), atol=1e-4, rtol=1e-4)

    print("KERNEL_OK")
</pallas_src>

<mosaic_0001>
module attributes {stable_mosaic.version = 11 : i64} {
  func.func @_sdpa_kernel(%arg0: i32, %arg1: i32, %arg2: memref<2x8x32xf32, #tpu.memory_space<vmem>>, %arg3: memref<2x32x128xf32, #tpu.memory_space<vmem>>, %arg4: memref<2x128x32xf32, #tpu.memory_space<vmem>>, %arg5: memref<2x8x32xf32, #tpu.memory_space<vmem>>, %arg6: memref<2x8x128xf32, #tpu.memory_space<vmem>>, %arg7: memref<2x8x128xf32, #tpu.memory_space<vmem>>) attributes {dimension_semantics = [#tpu.dimension_semantics<parallel>, #tpu.dimension_semantics<parallel>], iteration_bounds = array<i64: 1, 1>, scalar_prefetch = 0 : i64, scratch_operands = 0 : i64, tpu.core_type = #tpu.core_type<tc>, window_params = [{transform_indices = @transform_0, window_bounds = array<i64: 2, 8, 32>}, {pipeline_mode = #tpu.pipeline_mode<synchronous>, transform_indices = @transform_1, window_bounds = array<i64: 2, 32, 128>}, {pipeline_mode = #tpu.pipeline_mode<synchronous>, transform_indices = @transform_2, window_bounds = array<i64: 2, 128, 32>}, {transform_indices = @transform_3, window_bounds = array<i64: 2, 8, 32>}, {transform_indices = @transform_4, window_bounds = array<i64: 2, 8, 128>}, {transform_indices = @transform_5, window_bounds = array<i64: 2, 8, 128>}]} {
    %c0 = arith.constant 0 : index
    %c0_0 = arith.constant 0 : index
    %c0_1 = arith.constant 0 : index
    %0 = vector.load %arg2[%c0, %c0_0, %c0_1] : memref<2x8x32xf32, #tpu.memory_space<vmem>>, vector<2x8x32xf32>
    %cst = arith.constant 0.176776692 : f32
    %1 = vector.broadcast %cst : f32 to vector<2x8x32xf32>
    %2 = arith.mulf %0, %1 : vector<2x8x32xf32>
    %c0_2 = arith.constant 0 : index
    %c0_3 = arith.constant 0 : index
    %c0_4 = arith.constant 0 : index
    %3 = vector.load %arg3[%c0_2, %c0_3, %c0_4] : memref<2x32x128xf32, #tpu.memory_space<vmem>>, vector<2x32x128xf32>
    %c0_5 = arith.constant 0 : index
    %c0_6 = arith.constant 0 : index
    %c0_7 = arith.constant 0 : index
    %4 = vector.load %arg4[%c0_5, %c0_6, %c0_7] : memref<2x128x32xf32, #tpu.memory_space<vmem>>, vector<2x128x32xf32>
    "tpu.trace_start"() <{level = 10 : i32, message = "bqd,bdk->bqk"}> : () -> ()
    %cst_8 = arith.constant dense<0.000000e+00> : vector<2x8x128xf32>
    %5 = tpu.matmul %2, %3, %cst_8 {dimension_numbers = #tpu.dot_dimension_numbers<[2], [1], [1], [2], [0, 0, 0, 1, 1, 2], [0], [0]>} : vector<2x8x32xf32>, vector<2x32x128xf32>, vector<2x8x128xf32> -> vector<2x8x128xf32>
    "tpu.trace_stop"() : () -> ()
    %6 = tpu.iota {dimensions = array<i32: 2>} : vector<1x1x128xi32>
    %c8_i32 = arith.constant 8 : i32
    %7 = vector.broadcast %c8_i32 : i32 to vector<1x1x128xi32>
    %8 = arith.cmpi slt, %6, %7 : vector<1x1x128xi32>
    %cst_9 = arith.constant -3.40282347E+38 : f32
    %9 = vector.shape_cast %8 : vector<1x1x128xi1> to vector<1x1x128xi1>
    %10 = vector.broadcast %9 : vector<1x1x128xi1> to vector<2x8x128xi1>
    %11 = vector.broadcast %cst_9 : f32 to vector<2x8x128xf32>
    %12 = arith.select %10, %5, %11 : vector<2x8x128xi1>, vector<2x8x128xf32>
    %cst_10 = arith.constant dense<0xFF800000> : vector<2x8xf32>
    %13 = vector.multi_reduction <maximumf>, %12, %cst_10 [2] : vector<2x8x128xf32> to vector<2x8xf32>
    %14 = vector.shape_cast %13 : vector<2x8xf32> to vector<2x8x1xf32>
    %15 = vector.broadcast %14 : vector<2x8x1xf32> to vector<2x8x128xf32>
    %16 = arith.subf %12, %15 : vector<2x8x128xf32>
    %c0_11 = arith.constant 0 : index
    %c0_12 = arith.constant 0 : index
    %c0_13 = arith.constant 0 : index
    %17 = vector.load %arg7[%c0_11, %c0_12, %c0_13] : memref<2x8x128xf32, #tpu.memory_space<vmem>>, vector<2x8x128xf32>
    tpu.vector_store %arg7[%c0_11, %c0_12, %c0_13], %16 {strides = array<i32>} : memref<2x8x128xf32, #tpu.memory_space<vmem>>, vector<2x8x128xf32>,
    %c0_14 = arith.constant 0 : index
    %c0_15 = arith.constant 0 : index
    %c0_16 = arith.constant 0 : index
    %18 = vector.load %arg7[%c0_14, %c0_15, %c0_16] : memref<2x8x128xf32, #tpu.memory_space<vmem>>, vector<2x8x128xf32>
    %19 = math.exp %18 : vector<2x8x128xf32>
    %c0_17 = arith.constant 0 : index
    %c0_18 = arith.constant 0 : index
    %c0_19 = arith.constant 0 : index
    %20 = vector.load %arg6[%c0_17, %c0_18, %c0_19] : memref<2x8x128xf32, #tpu.memory_space<vmem>>, vector<2x8x128xf32>
    tpu.vector_store %arg6[%c0_17, %c0_18, %c0_19], %19 {strides = array<i32>} : memref<2x8x128xf32, #tpu.memory_space<vmem>>, vector<2x8x128xf32>,
    %c0_20 = arith.constant 0 : index
    %c0_21 = arith.constant 0 : index
    %c0_22 = arith.constant 0 : index
    %21 = vector.load %arg6[%c0_20, %c0_21, %c0_22] : memref<2x8x128xf32, #tpu.memory_space<vmem>>, vector<2x8x128xf32>
    %cst_23 = arith.constant dense<0.000000e+00> : vector<2x8xf32>
    %22 = vector.multi_reduction <add>, %21, %cst_23 [2] : vector<2x8x128xf32> to vector<2x8xf32>
    %23 = vector.shape_cast %22 : vector<2x8xf32> to vector<2x8x1xf32>
    %c0_24 = arith.constant 0 : index
    %c0_25 = arith.constant 0 : index
    %c0_26 = arith.constant 0 : index
    %24 = vector.load %arg6[%c0_24, %c0_25, %c0_26] : memref<2x8x128xf32, #tpu.memory_space<vmem>>, vector<2x8x128xf32>
    %25 = vector.broadcast %23 : vector<2x8x1xf32> to vector<2x8x128xf32>
    %26 = arith.divf %24, %25 : vector<2x8x128xf32>
    %c0_27 = arith.constant 0 : index
    %c0_28 = arith.constant 0 : index
    %c0_29 = arith.constant 0 : index
    %27 = vector.load %arg6[%c0_27, %c0_28, %c0_29] : memref<2x8x128xf32, #tpu.memory_space<vmem>>, vector<2x8x128xf32>
    tpu.vector_store %arg6[%c0_27, %c0_28, %c0_29], %26 {strides = array<i32>} : memref<2x8x128xf32, #tpu.memory_space<vmem>>, vector<2x8x128xf32>,
    %c0_30 = arith.constant 0 : index
    %c0_31 = arith.constant 0 : index
    %c0_32 = arith.constant 0 : index
    %28 = vector.load %arg7[%c0_30, %c0_31, %c0_32] : memref<2x8x128xf32, #tpu.memory_space<vmem>>, vector<2x8x128xf32>
    %29 = math.log %23 : vector<2x8x1xf32>
    %30 = vector.broadcast %29 : vector<2x8x1xf32> to vector<2x8x128xf32>
    %31 = arith.subf %28, %30 : vector<2x8x128xf32>
    %c0_33 = arith.constant 0 : index
    %c0_34 = arith.constant 0 : index
    %c0_35 = arith.constant 0 : index
    %32 = vector.load %arg7[%c0_33, %c0_34, %c0_35] : memref<2x8x128xf32, #tpu.memory_space<vmem>>, vector<2x8x128xf32>
    tpu.vector_store %arg7[%c0_33, %c0_34, %c0_35], %31 {strides = array<i32>} : memref<2x8x128xf32, #tpu.memory_space<vmem>>, vector<2x8x128xf32>,
    %c0_36 = arith.constant 0 : index
    %c0_37 = arith.constant 0 : index
    %c0_38 = arith.constant 0 : index
    %33 = vector.load %arg6[%c0_36, %c0_37, %c0_38] : memref<2x8x128xf32, #tpu.memory_space<vmem>>, vector<2x8x128xf32>
    "tpu.trace_start"() <{level = 10 : i32, message = "bqk,bkd->bqd"}> : () -> ()
    %cst_39 = arith.constant dense<0.000000e+00> : vector<2x8x32xf32>
    %34 = tpu.matmul %33, %4, %cst_39 {dimension_numbers = #tpu.dot_dimension_numbers<[2], [1], [1], [2], [0, 0, 0, 1, 1, 2], [0], [0]>} : vector<2x8x128xf32>, vector<2x128x32xf32>, vector<2x8x32xf32> -> vector<2x8x32xf32>
    "tpu.trace_stop"() : () -> ()
    %c0_40 = arith.constant 0 : index
    %c0_41 = arith.constant 0 : index
    %c0_42 = arith.constant 0 : index
    %35 = vector.load %arg5[%c0_40, %c0_41, %c0_42] : memref<2x8x32xf32, #tpu.memory_space<vmem>>, vector<2x8x32xf32>
    tpu.vector_store %arg5[%c0_40, %c0_41, %c0_42], %34 {strides = array<i32>} : memref<2x8x32xf32, #tpu.memory_space<vmem>>, vector<2x8x32xf32>,
    return
  }
  func.func @transform_0(%arg0: i32, %arg1: i32) -> (i32, i32, i32) {
    %c0_i32 = arith.constant 0 : i32
    %c0_i32_0 = arith.constant 0 : i32
    return %arg0, %arg1, %c0_i32 : i32, i32, i32
  }
  func.func @transform_1(%arg0: i32, %arg1: i32) -> (i32, i32, i32) {
    %c0_i32 = arith.constant 0 : i32
    %c0_i32_0 = arith.constant 0 : i32
    %c0_i32_1 = arith.constant 0 : i32
    return %arg0, %c0_i32, %c0_i32_0 : i32, i32, i32
  }
  func.func @transform_2(%arg0: i32, %arg1: i32) -> (i32, i32, i32) {
    %c0_i32 = arith.constant 0 : i32
    %c0_i32_0 = arith.constant 0 : i32
    %c0_i32_1 = arith.constant 0 : i32
    return %arg0, %c0_i32, %c0_i32_0 : i32, i32, i32
  }
  func.func @transform_3(%arg0: i32, %arg1: i32) -> (i32, i32, i32) {
    %c0_i32 = arith.constant 0 : i32
    %c0_i32_0 = arith.constant 0 : i32
    return %arg0, %arg1, %c0_i32 : i32, i32, i32
  }
  func.func @transform_4(%arg0: i32, %arg1: i32) -> (i32, i32, i32) {
    %c0_i32 = arith.constant 0 : i32
    %c0_i32_0 = arith.constant 0 : i32
    return %arg0, %arg1, %c0_i32 : i32, i32, i32
  }
  func.func @transform_5(%arg0: i32, %arg1: i32) -> (i32, i32, i32) {
    %c0_i32 = arith.constant 0 : i32
    %c0_i32_0 = arith.constant 0 : i32
    return %arg0, %arg1, %c0_i32 : i32, i32, i32
  }
}

</mosaic_0001>

<llo_original>
// kernel: tpu_custom_call.1
$region0: #{tpu_custom_call.1}
  #allocation0 [shape = 'u32[]', space=smem, size = 0x4, offset = 0x4, fixed_abs, tag = 'smem constant byte address 0x4 - core index']
  #allocation1 [shape = 'u32[144,128]{1,0:T(1,128)}', space=vmem, size = 0x12000, scoped, tag = 'internal scratch']
  %s0 = inlined_call_operand.vmem [shape: f32[2,8,32], index: 0, kind: input, shape index: {}]
  %s1 = inlined_call_operand.vmem [shape: f32[2,32,128], index: 1, kind: input, shape index: {}]
  %s2 = inlined_call_operand.vmem [shape: f32[2,128,32], index: 2, kind: input, shape index: {}]
  %s3 = inlined_call_operand.hbm [shape: f32[2,8,32], index: 3, kind: output, shape index: {0}]
  %s4 = inlined_call_operand.hbm [shape: f32[2,8,128], index: 4, kind: output, shape index: {1}]
  %s5 = inlined_call_operand.hbm [shape: f32[2,8,128], index: 5, kind: output, shape index: {2}]
  %6 = xla_tuple %s3, %s4, %s5
  %s7 = sld [smem:[#allocation0]]
  $region38: #{tpu_custom_call.1} parent=0
    _
  %s9 = ssub.s32 1, %s7
  %s10 = scalar_select 0, %s9, %s7
  $region1: #{tpu_custom_call.1} parent=0
    #allocation2 [shape = 'u8[8192]{0}', space=vmem, size = 0x2000, scoped, tag = 'output window, operand 0, single buffered']
    #allocation3 [shape = 's32[1]{0}', space=sflag, size = 0x4, scoped, tag = 'scoped memory for tpu_custom_call.1']
    #allocation4 [shape = 'u8[8192]{0}', space=vmem, size = 0x2000, scoped, tag = 'output window, operand 1, single buffered']
    #allocation5 [shape = 's32[1]{0}', space=sflag, size = 0x4, scoped, tag = 'scoped memory for tpu_custom_call.1']
    #allocation6 [shape = 'u8[8192]{0}', space=vmem, size = 0x2000, scoped, tag = 'output window, operand 2, single buffered']
    %11 = vsyncpa [#allocation3], 0
    %12 = vsyncpa [#allocation5], 0
    // Predicated region
    $region2: #{tpu_custom_call.1} parent=1 // pred_check
      _
    $region3: #{tpu_custom_call.1} parent=1 // pred_check_branch
      %14 = sbr.rel (0) target = $region5
    $region4: #{tpu_custom_call.1} parent=1 // pred_region
      _
    $region5: #{tpu_custom_call.1} parent=1 // pred_fallthru
      _
    // Predicated region
    $region6: #{tpu_custom_call.1} parent=1 // pred_check
      _
    $region7: #{tpu_custom_call.1} parent=1 // pred_check_branch
      %16 = sbr.rel (0) target = $region9
    $region8: #{tpu_custom_call.1} parent=1 // pred_region
      _
    $region9: #{tpu_custom_call.1} parent=1 // pred_fallthru
      _
    // Predicated region
    $region10: #{tpu_custom_call.1} parent=1 // pred_check
      _
    $region11: #{tpu_custom_call.1} parent=1 // pred_check_branch
      %18 = sbr.rel (0) target = $region13
    $region12: #{tpu_custom_call.1} parent=1 // pred_region
      _
    $region13: #{tpu_custom_call.1} parent=1 // pred_fallthru
      _
    %v19 = vld [vmem:[%s0] sm:$0xff]
    %v20 = vld [vmem:[%s0 + $0x8] sm:$0xff]
    %v21 = vmul.f32 %v19, 0.17677669
    %v22 = vmul.f32 %v20, 0.17677669
    %v23 = vld [vmem:[%s1] sm:$0xff]
    %v24 = vld [vmem:[%s1 + $0x8] sm:$0xff]
    %v25 = vld [vmem:[%s1 + $0x10] sm:$0xff]
    %v26 = vld [vmem:[%s1 + $0x18] sm:$0xff]
    %v27 = vld [vmem:[%s1 + $0x20] sm:$0xff]
    %v28 = vld [vmem:[%s1 + $0x28] sm:$0xff]
    %v29 = vld [vmem:[%s1 + $0x30] sm:$0xff]
    %v30 = vld [vmem:[%s1 + $0x38] sm:$0xff]
    %v31 = vld [vmem:[%s2] sm:$0xff]
    %v32 = vld [vmem:[%s2 + $0x8] sm:$0xff]
    %v33 = vld [vmem:[%s2 + $0x10] sm:$0xff]
    %v34 = vld [vmem:[%s2 + $0x18] sm:$0xff]
    %v35 = vld [vmem:[%s2 + $0x20] sm:$0xff]
    %v36 = vld [vmem:[%s2 + $0x28] sm:$0xff]
    %v37 = vld [vmem:[%s2 + $0x30] sm:$0xff]
    %v38 = vld [vmem:[%s2 + $0x38] sm:$0xff]
    %v39 = vld [vmem:[%s2 + $0x40] sm:$0xff]
    %v40 = vld [vmem:[%s2 + $0x48] sm:$0xff]
    %v41 = vld [vmem:[%s2 + $0x50] sm:$0xff]
    %v42 = vld [vmem:[%s2 + $0x58] sm:$0xff]
    %v43 = vld [vmem:[%s2 + $0x60] sm:$0xff]
    %v44 = vld [vmem:[%s2 + $0x68] sm:$0xff]
    %v45 = vld [vmem:[%s2 + $0x70] sm:$0xff]
    %v46 = vld [vmem:[%s2 + $0x78] sm:$0xff]
    %v47 = vld [vmem:[%s2 + $0x80] sm:$0xff]
    %v48 = vld [vmem:[%s2 + $0x88] sm:$0xff]
    %v49 = vld [vmem:[%s2 + $0x90] sm:$0xff]
    %v50 = vld [vmem:[%s2 + $0x98] sm:$0xff]
    %v51 = vld [vmem:[%s2 + $0xa0] sm:$0xff]
    %v52 = vld [vmem:[%s2 + $0xa8] sm:$0xff]
    %v53 = vld [vmem:[%s2 + $0xb0] sm:$0xff]
    %v54 = vld [vmem:[%s2 + $0xb8] sm:$0xff]
    %v55 = vld [vmem:[%s2 + $0xc0] sm:$0xff]
    %v56 = vld [vmem:[%s2 + $0xc8] sm:$0xff]
    %v57 = vld [vmem:[%s2 + $0xd0] sm:$0xff]
    %v58 = vld [vmem:[%s2 + $0xd8] sm:$0xff]
    %v59 = vld [vmem:[%s2 + $0xe0] sm:$0xff]
    %v60 = vld [vmem:[%s2 + $0xe8] sm:$0xff]
    %v61 = vld [vmem:[%s2 + $0xf0] sm:$0xff]
    %v62 = vld [vmem:[%s2 + $0xf8] sm:$0xff]
    %vm63 = vcmask 261120
    %v65 = vsel %vm63, %v21, 0
    %67 = vmatprep.subr.mxu0 0.0
    %68 = vmatpush1.msra.mxu0 %v23
    %69 = vmatprep.subr.mxu0 0.0
    %70 = vmatpush1.msra.mxu0 %v24
    %71 = vmatprep.subr.mxu0 0.0
    %72 = vmatpush1.msra.mxu0 %v25
    %73 = vmatprep.subr.mxu0 0.0
    %74 = vmatpush1.msra.mxu0 %v26
    %75 = vmatprep.subr.mxu0 0.0
    %76 = vmatpush1.msra.mxu0 0.0
    %77 = vmatprep.subr.mxu0 0.0
    %78 = vmatpush1.msra.mxu0 0.0
    %79 = vmatprep.subr.mxu0 0.0
    %80 = vmatpush1.msra.mxu0 0.0
    %81 = vmatprep.subr.mxu0 0.0
    %82 = vmatpush1.msra.mxu0 0.0
    %83 = vmatprep.subr.mxu0 0.0
    %84 = vmatpush1.msra.mxu0 0.0
    %85 = vmatprep.subr.mxu0 0.0
    %86 = vmatpush1.msra.mxu0 0.0
    %87 = vmatprep.subr.mxu0 0.0
    %88 = vmatpush1.msra.mxu0 0.0
    %89 = vmatprep.subr.mxu0 0.0
    %90 = vmatpush1.msra.mxu0 0.0
    %91 = vmatprep.subr.mxu0 0.0
    %92 = vmatpush1.msra.mxu0 0.0
    %93 = vmatprep.subr.mxu0 0.0
    %94 = vmatpush1.msra.mxu0 0.0
    %95 = vmatprep.subr.mxu0 0.0
    %96 = vmatpush1.msra.mxu0 0.0
    %97 = vmatprep.subr.mxu0 0.0
    %98 = vmatpush1.msra.mxu0 0.0
    %99 = vmatprep.subr.mxu0 0.0
    %100 = vmatpush1.msra.mxu0 0.0
    %101 = vmatprep.subr.mxu0 0.0
    %102 = vmatpush1.msra.mxu0 0.0
    %103 = vmatprep.subr.mxu0 0.0
    %104 = vmatpush1.msra.mxu0 0.0
    %105 = vmatprep.subr.mxu0 0.0
    %106 = vmatpush1.msra.mxu0 0.0
    %107 = vmatprep.subr.mxu0 0.0
    %108 = vmatpush1.msra.mxu0 0.0
    %109 = vmatprep.subr.mxu0 0.0
    %110 = vmatpush1.msra.mxu0 0.0
    %111 = vmatprep.subr.mxu0 0.0
    %112 = vmatpush1.msra.mxu0 0.0
    %113 = vmatprep.subr.mxu0 0.0
    %114 = vmatpush1.msra.mxu0 0.0
    %115 = vmatprep.subr.mxu0 0.0
    %116 = vmatpush1.msra.mxu0 0.0
    %117 = vmatprep.subr.mxu0 0.0
    %118 = vmatpush1.msra.mxu0 0.0
    %119 = vmatprep.subr.mxu0 0.0
    %120 = vmatpush1.msra.mxu0 0.0
    %121 = vmatprep.subr.mxu0 0.0
    %122 = vmatpush1.msra.mxu0 0.0
    %123 = vmatprep.subr.mxu0 0.0
    %124 = vmatpush1.msra.mxu0 0.0
    %125 = vmatprep.subr.mxu0 0.0
    %126 = vmatpush1.msra.mxu0 0.0
    %127 = vmatprep.subr.mxu0 0.0
    %128 = vmatpush1.msra.mxu0 0.0
    %129 = vmatprep.subr.mxu0 0.0
    %130 = vmatpush1.msra.mxu0 0.0
    %131 = vmatprep.mubr.f32.mxu0 0.0
    %132 = vmatmul.mubr.f32.gmra.mrb[0].mxu0 %v65
    %v133 = vpop.f32.mrb[0].mxu0
    %v134 = vadd.f32 0.0, %v133
    %v135 = vpop.f32.mrb[0].mxu0
    %136 = vdwg.mxu0
    %v138 = vsel %vm63, %v22, 0
    %140 = vmatprep.subr.mxu0 0.0
    %141 = vmatpush1.msra.mxu0 %v27
    %142 = vmatprep.subr.mxu0 0.0
    %143 = vmatpush1.msra.mxu0 %v28
    %144 = vmatprep.subr.mxu0 0.0
    %145 = vmatpush1.msra.mxu0 %v29
    %146 = vmatprep.subr.mxu0 0.0
    %147 = vmatpush1.msra.mxu0 %v30
    %148 = vmatprep.subr.mxu0 0.0
    %149 = vmatpush1.msra.mxu0 0.0
    %150 = vmatprep.subr.mxu0 0.0
    %151 = vmatpush1.msra.mxu0 0.0
    %152 = vmatprep.subr.mxu0 0.0
    %153 = vmatpush1.msra.mxu0 0.0
    %154 = vmatprep.subr.mxu0 0.0
    %155 = vmatpush1.msra.mxu0 0.0
    %156 = vmatprep.subr.mxu0 0.0
    %157 = vmatpush1.msra.mxu0 0.0
    %158 = vmatprep.subr.mxu0 0.0
    %159 = vmatpush1.msra.mxu0 0.0
    %160 = vmatprep.subr.mxu0 0.0
    %161 = vmatpush1.msra.mxu0 0.0
    %162 = vmatprep.subr.mxu0 0.0
    %163 = vmatpush1.msra.mxu0 0.0
    %164 = vmatprep.subr.mxu0 0.0
    %165 = vmatpush1.msra.mxu0 0.0
    %166 = vmatprep.subr.mxu0 0.0
    %167 = vmatpush1.msra.mxu0 0.0
    %168 = vmatprep.subr.mxu0 0.0
    %169 = vmatpush1.msra.mxu0 0.0
    %170 = vmatprep.subr.mxu0 0.0
    %171 = vmatpush1.msra.mxu0 0.0
    %172 = vmatprep.subr.mxu0 0.0
    %173 = vmatpush1.msra.mxu0 0.0
    %174 = vmatprep.subr.mxu0 0.0
    %175 = vmatpush1.msra.mxu0 0.0
    %176 = vmatprep.subr.mxu0 0.0
    %177 = vmatpush1.msra.mxu0 0.0
    %178 = vmatprep.subr.mxu0 0.0
    %179 = vmatpush1.msra.mxu0 0.0
    %180 = vmatprep.subr.mxu0 0.0
    %181 = vmatpush1.msra.mxu0 0.0
    %182 = vmatprep.subr.mxu0 0.0
    %183 = vmatpush1.msra.mxu0 0.0
    %184 = vmatprep.subr.mxu0 0.0
    %185 = vmatpush1.msra.mxu0 0.0
    %186 = vmatprep.subr.mxu0 0.0
    %187 = vmatpush1.msra.mxu0 0.0
    %188 = vmatprep.subr.mxu0 0.0
    %189 = vmatpush1.msra.mxu0 0.0
    %190 = vmatprep.subr.mxu0 0.0
    %191 = vmatpush1.msra.mxu0 0.0
    %192 = vmatprep.subr.mxu0 0.0
    %193 = vmatpush1.msra.mxu0 0.0
    %194 = vmatprep.subr.mxu0 0.0
    %195 = vmatpush1.msra.mxu0 0.0
    %196 = vmatprep.subr.mxu0 0.0
    %197 = vmatpush1.msra.mxu0 0.0
    %198 = vmatprep.subr.mxu0 0.0
    %199 = vmatpush1.msra.mxu0 0.0
    %200 = vmatprep.subr.mxu0 0.0
    %201 = vmatpush1.msra.mxu0 0.0
    %202 = vmatprep.subr.mxu0 0.0
    %203 = vmatpush1.msra.mxu0 0.0
    %204 = vmatprep.mubr.f32.mxu0 0.0
    %205 = vmatmul.mubr.f32.gmra.mrb[0].mxu0 %v138
    %v206 = vpop.f32.mrb[0].mxu0
    %v207 = vadd.f32 0.0, %v206
    %v208 = vpop.f32.mrb[0].mxu0
    %209 = vdwg.mxu0
    %v210 = vlaneseq
    %v211 = vand.u32 %v210, 127
    %vm212 = vcmp.lt.s32.totalorder %v211, 8
    %v213 = vsel %vm212, 1, 0
    %vm214 = vcmp.eq.s32.totalorder %v213, 1
    %v215 = vsel %vm214, %v134, -3.4028235e+38
    %v216 = vsel %vm214, %v207, -3.4028235e+38
    %217 = vmax.xlane.f32.xlu0 %v215
    %v218 = vpop.xlane.xlu0 %217
    %219 = vmax.xlane.f32.xlu0 %v216
    %v220 = vpop.xlane.xlu0 %219
    %v221 = vsub.f32 %v215, %v218
    %v222 = vsub.f32 %v216, %v220
    %223 = vst [vmem:[#allocation6] sm:$0xff] %v221
    %224 = vst [vmem:[#allocation6 + $0x8] sm:$0xff] %v222
    %v225 = vld [vmem:[#allocation6] sm:$0xff]
    %v226 = vld [vmem:[#allocation6 + $0x8] sm:$0xff]
    %v227 = vmul.f32 %v225, 1.442695
    %v228 = vpow.pop %v227
    %v229 = vmul.f32 %v226, 1.442695
    %v230 = vpow.pop %v229
    %231 = vst [vmem:[#allocation4] sm:$0xff] %v228
    %232 = vst [vmem:[#allocation4 + $0x8] sm:$0xff] %v230
    %v233 = vld [vmem:[#allocation4] sm:$0xff]
    %v234 = vld [vmem:[#allocation4 + $0x8] sm:$0xff]
    %235 = vadd.xlane.f32.xlu0 %v233
    %v236 = vpop.xlane.xlu0 %235
    %237 = vadd.xlane.f32.xlu0 %v234
    %v238 = vpop.xlane.xlu0 %237
    %v239 = vrcp.pop %v236
    %v240 = vmul.f32 %v233, %v239
    %v241 = vrcp.pop %v238
    %v242 = vmul.f32 %v234, %v241
    %243 = vst [vmem:[#allocation4] sm:$0xff] %v240
    %244 = vst [vmem:[#allocation4 + $0x8] sm:$0xff] %v242
    %v245 = vld [vmem:[#allocation6] sm:$0xff]
    %v246 = vld [vmem:[#allocation6 + $0x8] sm:$0xff]
    %v247 = vlog2.pop %v236
    %v248 = vmul.f32 %v247, 0.6931472
    %v249 = vlog2.pop %v238
    %v250 = vmul.f32 %v249, 0.6931472
    %v251 = vsub.f32 %v245, %v248
    %v252 = vsub.f32 %v246, %v250
    %253 = vst [vmem:[#allocation6] sm:$0xff] %v251
    %254 = vst [vmem:[#allocation6 + $0x8] sm:$0xff] %v252
    %v255 = vld [vmem:[#allocation4] sm:$0xff]
    %v256 = vld [vmem:[#allocation4 + $0x8] sm:$0xff]
    %257 = vmatprep.subr.mxu0 0.0
    %258 = vmatpush1.msra.mxu0 %v31
    %259 = vmatprep.subr.mxu0 0.0
    %260 = vmatpush1.msra.mxu0 %v32
    %261 = vmatprep.subr.mxu0 0.0
    %262 = vmatpush1.msra.mxu0 %v33
    %263 = vmatprep.subr.mxu0 0.0
    %264 = vmatpush1.msra.mxu0 %v34
    %265 = vmatprep.subr.mxu0 0.0
    %266 = vmatpush1.msra.mxu0 %v35
    %267 = vmatprep.subr.mxu0 0.0
    %268 = vmatpush1.msra.mxu0 %v36
    %269 = vmatprep.subr.mxu0 0.0
    %270 = vmatpush1.msra.mxu0 %v37
    %271 = vmatprep.subr.mxu0 0.0
    %272 = vmatpush1.msra.mxu0 %v38
    %273 = vmatprep.subr.mxu0 0.0
    %274 = vmatpush1.msra.mxu0 %v39
    %275 = vmatprep.subr.mxu0 0.0
    %276 = vmatpush1.msra.mxu0 %v40
    %277 = vmatprep.subr.mxu0 0.0
    %278 = vmatpush1.msra.mxu0 %v41
    %279 = vmatprep.subr.mxu0 0.0
    %280 = vmatpush1.msra.mxu0 %v42
    %281 = vmatprep.subr.mxu0 0.0
    %282 = vmatpush1.msra.mxu0 %v43
    %283 = vmatprep.subr.mxu0 0.0
    %284 = vmatpush1.msra.mxu0 %v44
    %285 = vmatprep.subr.mxu0 0.0
    %286 = vmatpush1.msra.mxu0 %v45
    %287 = vmatprep.subr.mxu0 0.0
    %288 = vmatpush1.msra.mxu0 %v46
    %289 = vmatprep.subr.mxu0 0.0
    %290 = vmatpush1.msra.mxu0 0.0
    %291 = vmatprep.subr.mxu0 0.0
    %292 = vmatpush1.msra.mxu0 0.0
    %293 = vmatprep.subr.mxu0 0.0
    %294 = vmatpush1.msra.mxu0 0.0
    %295 = vmatprep.subr.mxu0 0.0
    %296 = vmatpush1.msra.mxu0 0.0
    %297 = vmatprep.subr.mxu0 0.0
    %298 = vmatpush1.msra.mxu0 0.0
    %299 = vmatprep.subr.mxu0 0.0
    %300 = vmatpush1.msra.mxu0 0.0
    %301 = vmatprep.subr.mxu0 0.0
    %302 = vmatpush1.msra.mxu0 0.0
    %303 = vmatprep.subr.mxu0 0.0
    %304 = vmatpush1.msra.mxu0 0.0
    %305 = vmatprep.subr.mxu0 0.0
    %306 = vmatpush1.msra.mxu0 0.0
    %307 = vmatprep.subr.mxu0 0.0
    %308 = vmatpush1.msra.mxu0 0.0
    %309 = vmatprep.subr.mxu0 0.0
    %310 = vmatpush1.msra.mxu0 0.0
    %311 = vmatprep.subr.mxu0 0.0
    %312 = vmatpush1.msra.mxu0 0.0
    %313 = vmatprep.subr.mxu0 0.0
    %314 = vmatpush1.msra.mxu0 0.0
    %315 = vmatprep.subr.mxu0 0.0
    %316 = vmatpush1.msra.mxu0 0.0
    %317 = vmatprep.subr.mxu0 0.0
    %318 = vmatpush1.msra.mxu0 0.0
    %319 = vmatprep.subr.mxu0 0.0
    %320 = vmatpush1.msra.mxu0 0.0
    %321 = vmatprep.mubr.f32.mxu0 0.0
    %322 = vmatmul.mubr.f32.gmra.mrb[0].mxu0 %v255
    %v323 = vpop.f32.mrb[0].mxu0
    %v324 = vadd.f32 0.0, %v323
    %v325 = vpop.f32.mrb[0].mxu0
    %326 = vdwg.mxu0
    %327 = vmatprep.subr.mxu0 0.0
    %328 = vmatpush1.msra.mxu0 %v47
    %329 = vmatprep.subr.mxu0 0.0
    %330 = vmatpush1.msra.mxu0 %v48
    %331 = vmatprep.subr.mxu0 0.0
    %332 = vmatpush1.msra.mxu0 %v49
    %333 = vmatprep.subr.mxu0 0.0
    %334 = vmatpush1.msra.mxu0 %v50
    %335 = vmatprep.subr.mxu0 0.0
    %336 = vmatpush1.msra.mxu0 %v51
    %337 = vmatprep.subr.mxu0 0.0
    %338 = vmatpush1.msra.mxu0 %v52
    %339 = vmatprep.subr.mxu0 0.0
    %340 = vmatpush1.msra.mxu0 %v53
    %341 = vmatprep.subr.mxu0 0.0
    %342 = vmatpush1.msra.mxu0 %v54
    %343 = vmatprep.subr.mxu0 0.0
    %344 = vmatpush1.msra.mxu0 %v55
    %345 = vmatprep.subr.mxu0 0.0
    %346 = vmatpush1.msra.mxu0 %v56
    %347 = vmatprep.subr.mxu0 0.0
    %348 = vmatpush1.msra.mxu0 %v57
    %349 = vmatprep.subr.mxu0 0.0
    %350 = vmatpush1.msra.mxu0 %v58
    %351 = vmatprep.subr.mxu0 0.0
    %352 = vmatpush1.msra.mxu0 %v59
    %353 = vmatprep.subr.mxu0 0.0
    %354 = vmatpush1.msra.mxu0 %v60
    %355 = vmatprep.subr.mxu0 0.0
    %356 = vmatpush1.msra.mxu0 %v61
    %357 = vmatprep.subr.mxu0 0.0
    %358 = vmatpush1.msra.mxu0 %v62
    %359 = vmatprep.subr.mxu0 0.0
    %360 = vmatpush1.msra.mxu0 0.0
    %361 = vmatprep.subr.mxu0 0.0
    %362 = vmatpush1.msra.mxu0 0.0
    %363 = vmatprep.subr.mxu0 0.0
    %364 = vmatpush1.msra.mxu0 0.0
    %365 = vmatprep.subr.mxu0 0.0
    %366 = vmatpush1.msra.mxu0 0.0
    %367 = vmatprep.subr.mxu0 0.0
    %368 = vmatpush1.msra.mxu0 0.0
    %369 = vmatprep.subr.mxu0 0.0
    %370 = vmatpush1.msra.mxu0 0.0
    %371 = vmatprep.subr.mxu0 0.0
    %372 = vmatpush1.msra.mxu0 0.0
    %373 = vmatprep.subr.mxu0 0.0
    %374 = vmatpush1.msra.mxu0 0.0
    %375 = vmatprep.subr.mxu0 0.0
    %376 = vmatpush1.msra.mxu0 0.0
    %377 = vmatprep.subr.mxu0 0.0
    %378 = vmatpush1.msra.mxu0 0.0
    %379 = vmatprep.subr.mxu0 0.0
    %380 = vmatpush1.msra.mxu0 0.0
    %381 = vmatprep.subr.mxu0 0.0
    %382 = vmatpush1.msra.mxu0 0.0
    %383 = vmatprep.subr.mxu0 0.0
    %384 = vmatpush1.msra.mxu0 0.0
    %385 = vmatprep.subr.mxu0 0.0
    %386 = vmatpush1.msra.mxu0 0.0
    %387 = vmatprep.subr.mxu0 0.0
    %388 = vmatpush1.msra.mxu0 0.0
    %389 = vmatprep.subr.mxu0 0.0
    %390 = vmatpush1.msra.mxu0 0.0
    %391 = vmatprep.mubr.f32.mxu0 0.0
    %392 = vmatmul.mubr.f32.gmra.mrb[0].mxu0 %v256
    %v393 = vpop.f32.mrb[0].mxu0
    %v394 = vadd.f32 0.0, %v393
    %v395 = vpop.f32.mrb[0].mxu0
    %396 = vdwg.mxu0
    %397 = vst.msk [vmem:[#allocation2] sm:$0xff] %vm63, %v324
    %398 = vst.msk [vmem:[#allocation2 + $0x8] sm:$0xff] %vm63, %v394
    // Predicated region
    $region14: #{tpu_custom_call.1} parent=1 // pred_check
      _
    $region15: #{tpu_custom_call.1} parent=1 // pred_check_branch
      %400 = sbr.rel (0) target = $region17
    $region16: #{tpu_custom_call.1} parent=1 // pred_region
      %s402 = ssub.s32 256, 256
      %403 = vsyncadd [#allocation3], %s402
      %s404 = sshll.u32 [#allocation2], 4
      %s405 = int_to_ptr.vmem [resolvable:$true] %s404
      %410 = dma.vmem_to_hbm [thread:$0]  %s405, 256, %s3, [#allocation3], 128, 128, 8
    $region17: #{tpu_custom_call.1} parent=1 // pred_fallthru
      _
    // Predicated region
    $region18: #{tpu_custom_call.1} parent=1 // pred_check
      _
    $region19: #{tpu_custom_call.1} parent=1 // pred_check_branch
      %412 = sbr.rel (0) target = $region21
    $region20: #{tpu_custom_call.1} parent=1 // pred_region
      %s414 = ssub.s32 256, 256
      %415 = vsyncadd [#allocation5], %s414
      %s416 = sshll.u32 [#allocation4], 4
      %s417 = int_to_ptr.vmem [resolvable:$true] %s416
      %422 = dma.vmem_to_hbm [thread:$0]  %s417, 256, %s4, [#allocation5], 128, 128, 8
    $region21: #{tpu_custom_call.1} parent=1 // pred_fallthru
      _
    // Predicated region
    $region22: #{tpu_custom_call.1} parent=1 // pred_check
      _
    $region23: #{tpu_custom_call.1} parent=1 // pred_check_branch
      %424 = sbr.rel (0) target = $region25
    $region24: #{tpu_custom_call.1} parent=1 // pred_region
      %s426 = ssub.s32 256, 256
      %427 = vsyncadd [#allocation5], %s426
      %s428 = sshll.u32 [#allocation6], 4
      %s429 = int_to_ptr.vmem [resolvable:$true] %s428
      %434 = dma.vmem_to_hbm [thread:$0]  %s429, 256, %s5, [#allocation5], 128, 128, 8
    $region25: #{tpu_custom_call.1} parent=1 // pred_fallthru
      _
    // Predicated region
    $region26: #{tpu_custom_call.1} parent=1 // pred_check
      _
    $region27: #{tpu_custom_call.1} parent=1 // pred_check_branch
      %436 = sbr.rel (0) target = $region29
    $region28: #{tpu_custom_call.1} parent=1 // pred_region
      %437 = dma.done [#allocation3], 256
    $region29: #{tpu_custom_call.1} parent=1 // pred_fallthru
      _
    // Predicated region
    $region30: #{tpu_custom_call.1} parent=1 // pred_check
      _
    $region31: #{tpu_custom_call.1} parent=1 // pred_check_branch
      %439 = sbr.rel (0) target = $region33
    $region32: #{tpu_custom_call.1} parent=1 // pred_region
      %440 = dma.done [#allocation5], 256
    $region33: #{tpu_custom_call.1} parent=1 // pred_fallthru
      _
    // Predicated region
    $region34: #{tpu_custom_call.1} parent=1 // pred_check
      _
    $region35: #{tpu_custom_call.1} parent=1 // pred_check_branch
      %442 = sbr.rel (0) target = $region37
    $region36: #{tpu_custom_call.1} parent=1 // pred_region
      %443 = dma.done [#allocation5], 256
    $region37: #{tpu_custom_call.1} parent=1 // pred_fallthru
      _
    %444 = vsyncpa [#allocation3], 1
    %445 = vsyncpa [#allocation5], 1

</llo_original>
